<compile_context>
chip_gen: v5e
topology: v5e:2x2
jax: 0.10.0
libtpu: 0.0.40
codegen_flags: <defaults>
</compile_context>

<pallas_src>
import jax
import jax.numpy as jnp
from jax.experimental import pallas as pl
from jax.experimental.pallas import tpu as pltpu


def _make_conv1x1_kernel(bf16_matmul: bool):
    def kernel(w_ref, x_ref, o_ref):
        # w_ref: (Cout, Cin), x_ref: (Cin, tile_hw), o_ref: (Cout, tile_hw)
        w = w_ref[...]
        x = x_ref[...]
        if bf16_matmul:
            # Native bf16 MXU pass; accumulation stays f32.
            w = w.astype(jnp.bfloat16)
            x = x.astype(jnp.bfloat16)
        o_ref[...] = jnp.dot(w, x, preferred_element_type=jnp.float32)

    return kernel


def _pick_tile_hw(hw: int) -> int:
    """128-aligned spatial tile; >=2 tiles when possible (v7x megacore)."""
    if hw <= 128:
        return hw  # single full-extent block (legal even if not 128-aligned)
    if hw <= 4096:
        # Split into >=2 tiles so a 'parallel' spatial axis can shard across
        # v7x's two TensorCores; mid sizes use ~half of HW rounded to 128.
        return max(128, ((hw // 2) // 128) * 128)
    # Large-HW path: 2048-lane tiles keep per-step overhead <10% of DMA time
    # and the double-buffered working set (~9 MiB) inside scoped VMEM.
    return 2048


def conv2d_1x1(
    x_nchw: jax.Array, weight_oihw: jax.Array, *, bf16_matmul: bool = True
) -> jax.Array:
    """1x1 conv, stride 1, no bias.  x: [N, Cin, H, W], weight: [Cout, Cin, 1, 1]."""
    n, cin, h, w = x_nchw.shape
    cout = weight_oihw.shape[0]
    hw = h * w

    # Free reshapes (no data movement): NCHW -> [N, Cin, HW], OIHW -> [Cout, Cin].
    x3d = x_nchw.reshape(n, cin, hw)
    w2d = weight_oihw.reshape(cout, cin)

    tile_hw = _pick_tile_hw(hw)
    grid = (n, pl.cdiv(hw, tile_hw))

    cost = pl.CostEstimate(
        flops=2 * n * cout * cin * hw,
        transcendentals=0,
        bytes_accessed=(n * cin * hw + cout * cin + n * cout * hw) * 4,
    )

    out3d = pl.pallas_call(
        _make_conv1x1_kernel(bf16_matmul),
        out_shape=jax.ShapeDtypeStruct((n, cout, hw), jnp.float32),
        grid=grid,
        in_specs=[
            # Weight: constant index_map -> stays resident in VMEM across steps.
            pl.BlockSpec((cout, cin), lambda b, m: (0, 0)),
            # One batch sample, one spatial tile per grid step.
            pl.BlockSpec((pl.Squeezed(), cin, tile_hw), lambda b, m: (b, 0, m)),
        ],
        out_specs=pl.BlockSpec(
            (pl.Squeezed(), cout, tile_hw), lambda b, m: (b, 0, m)
        ),
        compiler_params=pltpu.CompilerParams(
            dimension_semantics=("parallel", "parallel")
        ),
        cost_estimate=cost,
    )(w2d, x3d)

    # Free reshape back to NCHW.
    return out3d.reshape(n, cout, h, w)


if __name__ == "__main__":
    key = jax.random.PRNGKey(0)
    kx, kw = jax.random.split(key)

    # Shapes implied by the module: Conv2d(576, 96, 1x1), input [1, 576, 14, 14].
    N, CIN, H, W = 1, 576, 14, 14
    COUT = 96

    x = jax.random.normal(kx, (N, CIN, H, W), dtype=jnp.float32)
    weight = jax.random.normal(kw, (COUT, CIN, 1, 1), dtype=jnp.float32) * 0.02

    out = jax.block_until_ready(conv2d_1x1(x, weight))

    # Reference: 1x1 conv == per-pixel channel matmul (f32).
    ref = jnp.einsum("nchw,oc->nohw", x, weight.reshape(COUT, CIN))
    assert out.shape == (N, COUT, H, W), out.shape
    # Tolerance loosened for the bf16-operand MXU path (f32 accumulation).
    assert jnp.allclose(out, ref, atol=2e-2, rtol=2e-2), "mismatch vs reference"

    print("KERNEL_OK")
</pallas_src>

<mosaic_0001>
module attributes {stable_mosaic.version = 11 : i64} {
  func.func @kernel(%arg0: i32, %arg1: i32, %arg2: memref<96x576xf32, #tpu.memory_space<vmem>>, %arg3: memref<1x576x128xf32, #tpu.memory_space<vmem>>, %arg4: memref<1x96x128xf32, #tpu.memory_space<vmem>>) attributes {dimension_semantics = [#tpu.dimension_semantics<parallel>, #tpu.dimension_semantics<parallel>], iteration_bounds = array<i64: 1, 2>, scalar_prefetch = 0 : i64, scratch_operands = 0 : i64, tpu.core_type = #tpu.core_type<tc>, window_params = [{pipeline_mode = #tpu.pipeline_mode<synchronous>, transform_indices = @transform_0, window_bounds = array<i64: 96, 576>}, {transform_indices = @transform_1, window_bounds = array<i64: 1, 576, 128>}, {transform_indices = @transform_2, window_bounds = array<i64: 1, 96, 128>}]} {
    %c0 = arith.constant 0 : index
    %c0_0 = arith.constant 0 : index
    %0 = vector.load %arg2[%c0, %c0_0] : memref<96x576xf32, #tpu.memory_space<vmem>>, vector<96x576xf32>
    %c0_1 = arith.constant 0 : index
    %c0_2 = arith.constant 0 : index
    %c0_3 = arith.constant 0 : index
    %1 = vector.load %arg3[%c0_1, %c0_2, %c0_3] : memref<1x576x128xf32, #tpu.memory_space<vmem>>, vector<1x576x128xf32>
    %2 = vector.shape_cast %1 : vector<1x576x128xf32> to vector<576x128xf32>
    %3 = arith.truncf %0 : vector<96x576xf32> to vector<96x576xbf16>
    %4 = arith.truncf %2 : vector<576x128xf32> to vector<576x128xbf16>
    %cst = arith.constant dense<0.000000e+00> : vector<96x128xf32>
    %5 = tpu.matmul %3, %4, %cst {dimension_numbers = #tpu.dot_dimension_numbers<[1], [0], [0], [1], [0, 0, 1, 1], [], []>} : vector<96x576xbf16>, vector<576x128xbf16>, vector<96x128xf32> -> vector<96x128xf32>
    %c0_4 = arith.constant 0 : index
    %c0_5 = arith.constant 0 : index
    %c0_6 = arith.constant 0 : index
    %6 = vector.load %arg4[%c0_4, %c0_5, %c0_6] : memref<1x96x128xf32, #tpu.memory_space<vmem>>, vector<1x96x128xf32>
    %7 = vector.shape_cast %6 : vector<1x96x128xf32> to vector<96x128xf32>
    %8 = vector.shape_cast %5 : vector<96x128xf32> to vector<1x96x128xf32>
    tpu.vector_store %arg4[%c0_4, %c0_5, %c0_6], %8 {strides = array<i32>} : memref<1x96x128xf32, #tpu.memory_space<vmem>>, vector<1x96x128xf32>,
    return
  }
  func.func @transform_0(%arg0: i32, %arg1: i32) -> (i32, i32) {
    %c0_i32 = arith.constant 0 : i32
    %c0_i32_0 = arith.constant 0 : i32
    %c0_i32_1 = arith.constant 0 : i32
    return %c0_i32, %c0_i32_0 : i32, i32
  }
  func.func @transform_1(%arg0: i32, %arg1: i32) -> (i32, i32, i32) {
    %c0_i32 = arith.constant 0 : i32
    %c0_i32_0 = arith.constant 0 : i32
    return %arg0, %c0_i32, %arg1 : i32, i32, i32
  }
  func.func @transform_2(%arg0: i32, %arg1: i32) -> (i32, i32, i32) {
    %c0_i32 = arith.constant 0 : i32
    %c0_i32_0 = arith.constant 0 : i32
    return %arg0, %c0_i32, %arg1 : i32, i32, i32
  }
}

</mosaic_0001>

<llo_original>
// kernel: tpu_custom_call.1
$region0: #{tpu_custom_call.1}
  #allocation0 [shape = 'u32[]', space=smem, size = 0x4, offset = 0x4, fixed_abs, tag = 'smem constant byte address 0x4 - core index']
  #allocation1 [shape = 'u32[72,128]{1,0:T(1,128)}', space=vmem, size = 0x9000, scoped, tag = 'internal scratch']
  %s0 = inlined_call_operand.vmem [shape: f32[96,576], index: 0, kind: input, shape index: {}]
  %s1 = inlined_call_operand.vmem [shape: f32[1,576,196], index: 1, kind: input, shape index: {}]
  %s2 = inlined_call_operand.hbm [shape: f32[1,96,196], index: 2, kind: output, shape index: {}]
  %s3 = sld [smem:[#allocation0]]
  $region79: #{tpu_custom_call.1} parent=0
    _
  %s5 = ssub.s32 1, %s3
  %s6 = scalar_select 0, %s5, %s3
  $region1: #{tpu_custom_call.1} parent=0
    #allocation2 [shape = 'u8[589824]{0}', space=vmem, size = 0x90000, scoped, tag = 'input window, operand 1']
    #allocation3 [shape = 'u8[98304]{0}', space=vmem, size = 0x18000, scoped, tag = 'output window, operand 0']
    #allocation4 [shape = 's32[2]{0}', space=sflag, size = 0x8, scoped, tag = 'scoped memory for tpu_custom_call.1']
    %7 = vsyncpa [#allocation4], 0
    %s8 = scalar_lea.sflag [#allocation4], 1
    %9 = vsyncpa %s8, 0
    loop: start=0, step=1, limit=4
    $region2: #{tpu_custom_call.1} parent=1 // loop_pre_header
      _
    $region3: #{tpu_custom_call.1} parent=1 // loop_header
      %s11 = sphi 0, %s15
      %p12 = scmp.ge.s32.totalorder %s11, 4
      %s18 = sphi 0, %s30
      %s19 = sphi 0, %s26
      %s20 = sphi 0, %s18
      %s21 = sphi 0, %s19
      %s22 = sphi 0, %s20
      %s23 = sphi 0, %s21
      %s31 = sphi 0, %s31
      %s33 = sphi 0, %s31
      %s34 = sphi 0, %s33
      %s48 = sphi 0, %s34
      %s56 = sphi 0, %s58
      %s59 = sphi 0, %s56
      %s60 = sphi 0, %s59
      %s76 = sphi 0, %s60
      %s84 = sphi 0, %s86
      %s87 = sphi 0, %s84
      %s88 = sphi 0, %s87
      %s104 = sphi 0, %s88
    $region4: #{tpu_custom_call.1} parent=1 // loop_header_branch
      %14 = sbr.rel (%p12) target = $region8
    $region5: #{tpu_custom_call.1} parent=1 // loop_body
      %s16 = ssub.s32 %s11, 1
      %s17 = ssub.s32 %s11, 2
      %s24 = sadd.s32 1, %s19
      %p25 = scmp.ge.s32.totalorder %s24, 2
      %s26 = scalar_select %p25, 0, %s24
      %s27 = sadd.s32 1, %s18
      %s28 = scalar_select %p25, %s27, %s18
      %p29 = scmp.ge.s32.totalorder %s28, 1
      %s30 = scalar_select %p29, 0, %s28
      %s32 = sadd.s32 %s31, 1
      %p35 = scmp.eq.s32.totalorder %s11, 1
      %p36 = scmp.ne.s32.totalorder %s31, %s33
      %p37 = scmp.eq.s32.totalorder %s11, 0
      %p38 = por %p36, %p37
      %p39 = scmp.ne.s32.totalorder %s31, %s33
      %p40 = scmp.eq.s32.totalorder %s16, 1
      %p41 = por %p39, %p40
      %p42 = scmp.ne.s32.totalorder %s33, %s34
      %p43 = scmp.eq.s32.totalorder %s16, 0
      %p44 = por %p42, %p43
      %p45 = scmp.ne.s32.totalorder %s33, %s34
      %p46 = scmp.eq.s32.totalorder %s17, 1
      %p47 = por %p45, %p46
      %p49 = scmp.ne.s32.totalorder %s34, %s48
      %p50 = scmp.eq.s32.totalorder %s17, 0
      %p51 = por %p49, %p50
      %s52 = ssub.s32 %s18, %s30
      %s53 = ssub.s32 %s19, %s26
      %s54 = sor.u32 %s52, %s53
      %p55 = scmp.eq.s32.totalorder %s54, 0
      %s57 = sadd.s32 %s56, 1
      %s58 = scalar_select %p55, %s56, %s57
      %p61 = pneg %p55
      %p62 = scmp.eq.s32.totalorder %s11, 1
      %p63 = por %p61, %p62
      %p64 = scmp.ne.s32.totalorder %s56, %s59
      %p65 = scmp.eq.s32.totalorder %s11, 0
      %p66 = por %p64, %p65
      %p67 = scmp.ne.s32.totalorder %s56, %s59
      %p68 = scmp.eq.s32.totalorder %s16, 1
      %p69 = por %p67, %p68
      %p70 = scmp.ne.s32.totalorder %s59, %s60
      %p71 = scmp.eq.s32.totalorder %s16, 0
      %p72 = por %p70, %p71
      %p73 = scmp.ne.s32.totalorder %s59, %s60
      %p74 = scmp.eq.s32.totalorder %s17, 1
      %p75 = por %p73, %p74
      %p77 = scmp.ne.s32.totalorder %s60, %s76
      %p78 = scmp.eq.s32.totalorder %s17, 0
      %p79 = por %p77, %p78
      %s80 = ssub.s32 %s18, %s30
      %s81 = ssub.s32 %s19, %s26
      %s82 = sor.u32 %s80, %s81
      %p83 = scmp.eq.s32.totalorder %s82, 0
      %s85 = sadd.s32 %s84, 1
      %s86 = scalar_select %p83, %s84, %s85
      %p89 = pneg %p83
      %p90 = scmp.eq.s32.totalorder %s11, 1
      %p91 = por %p89, %p90
      %p92 = scmp.ne.s32.totalorder %s84, %s87
      %p93 = scmp.eq.s32.totalorder %s11, 0
      %p94 = por %p92, %p93
      %p95 = scmp.ne.s32.totalorder %s84, %s87
      %p96 = scmp.eq.s32.totalorder %s16, 1
      %p97 = por %p95, %p96
      %p98 = scmp.ne.s32.totalorder %s87, %s88
      %p99 = scmp.eq.s32.totalorder %s16, 0
      %p100 = por %p98, %p99
      %p101 = scmp.ne.s32.totalorder %s87, %s88
      %p102 = scmp.eq.s32.totalorder %s17, 1
      %p103 = por %p101, %p102
      %p105 = scmp.ne.s32.totalorder %s88, %s104
      %p106 = scmp.eq.s32.totalorder %s17, 0
      %p107 = por %p105, %p106
      %p108 = scmp.le.s32.totalorder 1, %s11
      %p109 = scmp.lt.s32.totalorder %s11, 3
      %p110 = pnand %p108, %p109
      %p111 = pneg %p110
      // Predicated region
      $region9: #{tpu_custom_call.1} parent=5 // pred_check
        _
      $region10: #{tpu_custom_call.1} parent=5 // pred_check_branch
        %113 = sbr.rel (%p110) target = $region12
      $region11: #{tpu_custom_call.1} parent=5 // pred_region
        %s114 = ssub.s32 %s11, 1
        // Predicated region
        $region13: #{tpu_custom_call.1} parent=11 // pred_check
          %p115 = pneg %p44
        $region14: #{tpu_custom_call.1} parent=11 // pred_check_branch
          %117 = sbr.rel (%p115) target = $region16
        $region15: #{tpu_custom_call.1} parent=11 // pred_region
          _
        $region16: #{tpu_custom_call.1} parent=11 // pred_fallthru
          _
      $region12: #{tpu_custom_call.1} parent=5 // pred_fallthru
        _
      %p118 = scmp.lt.s32.totalorder %s11, 2
      // Predicated region
      $region17: #{tpu_custom_call.1} parent=5 // pred_check
        %p119 = pneg %p118
      $region18: #{tpu_custom_call.1} parent=5 // pred_check_branch
        %121 = sbr.rel (%p119) target = $region20
      $region19: #{tpu_custom_call.1} parent=5 // pred_region
        // Predicated region
        $region21: #{tpu_custom_call.1} parent=19 // pred_check
          %p122 = pneg %p66
        $region22: #{tpu_custom_call.1} parent=19 // pred_check_branch
          %124 = sbr.rel (%p122) target = $region24
        $region23: #{tpu_custom_call.1} parent=19 // pred_region
          %s125 = sand.u32 %s56, 1
          %s126 = sand.u32 %s56, 1
          %s127 = smul.addr %s126, 576
          %s128 = scalar_lea.vmem [#allocation2], %s127
          %s129 = smul.addr %s18, 144
          %s130 = sadd.s32 %s19, %s129
          %s131 = smul.addr %s130, 8
          %s132 = scalar_lea.vmem %s1, %s131
          // Predicated region
          $region25: #{tpu_custom_call.1} parent=23 // pred_check
            _
          $region26: #{tpu_custom_call.1} parent=23 // pred_check_branch
            %134 = sbr.rel (0) target = $region28
          $region27: #{tpu_custom_call.1} parent=23 // pred_region
            // Predicated region
            $region29: #{tpu_custom_call.1} parent=27 // pred_check
              _
            $region30: #{tpu_custom_call.1} parent=27 // pred_check_branch
              %136 = sbr.rel (0) target = $region32
            $region31: #{tpu_custom_call.1} parent=27 // pred_region
              // Predicated region
              $region44: #{tpu_custom_call.1} parent=31 // pred_check
                _
              $region45: #{tpu_custom_call.1} parent=31 // pred_check_branch
                %294 = sbr.rel (0) target = $region47
              $region46: #{tpu_custom_call.1} parent=31 // pred_region
                loop: start=0, step=1, limit=1
                $region48: #{tpu_custom_call.1} parent=46 // loop_pre_header
                  _
                $region49: #{tpu_custom_call.1} parent=46 // loop_header
                  %s296 = sphi 0, %s300
                  %p297 = scmp.ge.s32.totalorder %s296, 1
                  %s301 = sphi %s132, %s132
                  %s302 = sphi %s128, %s128
                $region50: #{tpu_custom_call.1} parent=46 // loop_header_branch
                  %299 = sbr.rel (%p297) target = $region54
                $region51: #{tpu_custom_call.1} parent=46 // loop_body
                  %v303 = vld [vmem:[%s301] sm:$0xff]
                  %304 = vst [vmem:[%s302] sm:$0xff] %v303
                  %v305 = vld [vmem:[%s301 + $0x10] sm:$0xff]
                  %306 = vst [vmem:[%s302 + $0x8] sm:$0xff] %v305
                  %v307 = vld [vmem:[%s301 + $0x20] sm:$0xff]
                  %308 = vst [vmem:[%s302 + $0x10] sm:$0xff] %v307
                  %v309 = vld [vmem:[%s301 + $0x30] sm:$0xff]
                  %310 = vst [vmem:[%s302 + $0x18] sm:$0xff] %v309
                  %v311 = vld [vmem:[%s301 + $0x40] sm:$0xff]
                  %312 = vst [vmem:[%s302 + $0x20] sm:$0xff] %v311
                  %v313 = vld [vmem:[%s301 + $0x50] sm:$0xff]
                  %314 = vst [vmem:[%s302 + $0x28] sm:$0xff] %v313
                  %v315 = vld [vmem:[%s301 + $0x60] sm:$0xff]
                  %316 = vst [vmem:[%s302 + $0x30] sm:$0xff] %v315
                  %v317 = vld [vmem:[%s301 + $0x70] sm:$0xff]
                  %318 = vst [vmem:[%s302 + $0x38] sm:$0xff] %v317
                  %v319 = vld [vmem:[%s301 + $0x80] sm:$0xff]
                  %320 = vst [vmem:[%s302 + $0x40] sm:$0xff] %v319
                  %v321 = vld [vmem:[%s301 + $0x90] sm:$0xff]
                  %322 = vst [vmem:[%s302 + $0x48] sm:$0xff] %v321
                  %v323 = vld [vmem:[%s301 + $0xa0] sm:$0xff]
                  %324 = vst [vmem:[%s302 + $0x50] sm:$0xff] %v323
                  %v325 = vld [vmem:[%s301 + $0xb0] sm:$0xff]
                  %326 = vst [vmem:[%s302 + $0x58] sm:$0xff] %v325
                  %v327 = vld [vmem:[%s301 + $0xc0] sm:$0xff]
                  %328 = vst [vmem:[%s302 + $0x60] sm:$0xff] %v327
                  %v329 = vld [vmem:[%s301 + $0xd0] sm:$0xff]
                  %330 = vst [vmem:[%s302 + $0x68] sm:$0xff] %v329
                  %v331 = vld [vmem:[%s301 + $0xe0] sm:$0xff]
                  %332 = vst [vmem:[%s302 + $0x70] sm:$0xff] %v331
                  %v333 = vld [vmem:[%s301 + $0xf0] sm:$0xff]
                  %334 = vst [vmem:[%s302 + $0x78] sm:$0xff] %v333
                  %v335 = vld [vmem:[%s301 + $0x100] sm:$0xff]
                  %336 = vst [vmem:[%s302 + $0x80] sm:$0xff] %v335
                  %v337 = vld [vmem:[%s301 + $0x110] sm:$0xff]
                  %338 = vst [vmem:[%s302 + $0x88] sm:$0xff] %v337
                  %v339 = vld [vmem:[%s301 + $0x120] sm:$0xff]
                  %340 = vst [vmem:[%s302 + $0x90] sm:$0xff] %v339
                  %v341 = vld [vmem:[%s301 + $0x130] sm:$0xff]
                  %342 = vst [vmem:[%s302 + $0x98] sm:$0xff] %v341
                  %v343 = vld [vmem:[%s301 + $0x140] sm:$0xff]
                  %344 = vst [vmem:[%s302 + $0xa0] sm:$0xff] %v343
                  %v345 = vld [vmem:[%s301 + $0x150] sm:$0xff]
                  %346 = vst [vmem:[%s302 + $0xa8] sm:$0xff] %v345
                  %v347 = vld [vmem:[%s301 + $0x160] sm:$0xff]
                  %348 = vst [vmem:[%s302 + $0xb0] sm:$0xff] %v347
                  %v349 = vld [vmem:[%s301 + $0x170] sm:$0xff]
                  %350 = vst [vmem:[%s302 + $0xb8] sm:$0xff] %v349
                  %v351 = vld [vmem:[%s301 + $0x180] sm:$0xff]
                  %352 = vst [vmem:[%s302 + $0xc0] sm:$0xff] %v351
                  %v353 = vld [vmem:[%s301 + $0x190] sm:$0xff]
                  %354 = vst [vmem:[%s302 + $0xc8] sm:$0xff] %v353
                  %v355 = vld [vmem:[%s301 + $0x1a0] sm:$0xff]
                  %356 = vst [vmem:[%s302 + $0xd0] sm:$0xff] %v355
                  %v357 = vld [vmem:[%s301 + $0x1b0] sm:$0xff]
                  %358 = vst [vmem:[%s302 + $0xd8] sm:$0xff] %v357
                  %v359 = vld [vmem:[%s301 + $0x1c0] sm:$0xff]
                  %360 = vst [vmem:[%s302 + $0xe0] sm:$0xff] %v359
                  %v361 = vld [vmem:[%s301 + $0x1d0] sm:$0xff]
                  %362 = vst [vmem:[%s302 + $0xe8] sm:$0xff] %v361
                  %v363 = vld [vmem:[%s301 + $0x1e0] sm:$0xff]
                  %364 = vst [vmem:[%s302 + $0xf0] sm:$0xff] %v363
                  %v365 = vld [vmem:[%s301 + $0x1f0] sm:$0xff]
                  %366 = vst [vmem:[%s302 + $0xf8] sm:$0xff] %v365
                  %v367 = vld [vmem:[%s301 + $0x200] sm:$0xff]
                  %368 = vst [vmem:[%s302 + $0x100] sm:$0xff] %v367
                  %v369 = vld [vmem:[%s301 + $0x210] sm:$0xff]
                  %370 = vst [vmem:[%s302 + $0x108] sm:$0xff] %v369
                  %v371 = vld [vmem:[%s301 + $0x220] sm:$0xff]
                  %372 = vst [vmem:[%s302 + $0x110] sm:$0xff] %v371
                  %v373 = vld [vmem:[%s301 + $0x230] sm:$0xff]
                  %374 = vst [vmem:[%s302 + $0x118] sm:$0xff] %v373
                  %v375 = vld [vmem:[%s301 + $0x240] sm:$0xff]
                  %376 = vst [vmem:[%s302 + $0x120] sm:$0xff] %v375
                  %v377 = vld [vmem:[%s301 + $0x250] sm:$0xff]
                  %378 = vst [vmem:[%s302 + $0x128] sm:$0xff] %v377
                  %v379 = vld [vmem:[%s301 + $0x260] sm:$0xff]
                  %380 = vst [vmem:[%s302 + $0x130] sm:$0xff] %v379
                  %v381 = vld [vmem:[%s301 + $0x270] sm:$0xff]
                  %382 = vst [vmem:[%s302 + $0x138] sm:$0xff] %v381
                  %v383 = vld [vmem:[%s301 + $0x280] sm:$0xff]
                  %384 = vst [vmem:[%s302 + $0x140] sm:$0xff] %v383
                  %v385 = vld [vmem:[%s301 + $0x290] sm:$0xff]
                  %386 = vst [vmem:[%s302 + $0x148] sm:$0xff] %v385
                  %v387 = vld [vmem:[%s301 + $0x2a0] sm:$0xff]
                  %388 = vst [vmem:[%s302 + $0x150] sm:$0xff] %v387
                  %v389 = vld [vmem:[%s301 + $0x2b0] sm:$0xff]
                  %390 = vst [vmem:[%s302 + $0x158] sm:$0xff] %v389
                  %v391 = vld [vmem:[%s301 + $0x2c0] sm:$0xff]
                  %392 = vst [vmem:[%s302 + $0x160] sm:$0xff] %v391
                  %v393 = vld [vmem:[%s301 + $0x2d0] sm:$0xff]
                  %394 = vst [vmem:[%s302 + $0x168] sm:$0xff] %v393
                  %v395 = vld [vmem:[%s301 + $0x2e0] sm:$0xff]
                  %396 = vst [vmem:[%s302 + $0x170] sm:$0xff] %v395
                  %v397 = vld [vmem:[%s301 + $0x2f0] sm:$0xff]
                  %398 = vst [vmem:[%s302 + $0x178] sm:$0xff] %v397
                  %v399 = vld [vmem:[%s301 + $0x300] sm:$0xff]
                  %400 = vst [vmem:[%s302 + $0x180] sm:$0xff] %v399
                  %v401 = vld [vmem:[%s301 + $0x310] sm:$0xff]
                  %402 = vst [vmem:[%s302 + $0x188] sm:$0xff] %v401
                  %v403 = vld [vmem:[%s301 + $0x320] sm:$0xff]
                  %404 = vst [vmem:[%s302 + $0x190] sm:$0xff] %v403
                  %v405 = vld [vmem:[%s301 + $0x330] sm:$0xff]
                  %406 = vst [vmem:[%s302 + $0x198] sm:$0xff] %v405
                  %v407 = vld [vmem:[%s301 + $0x340] sm:$0xff]
                  %408 = vst [vmem:[%s302 + $0x1a0] sm:$0xff] %v407
                  %v409 = vld [vmem:[%s301 + $0x350] sm:$0xff]
                  %410 = vst [vmem:[%s302 + $0x1a8] sm:$0xff] %v409
                  %v411 = vld [vmem:[%s301 + $0x360] sm:$0xff]
                  %412 = vst [vmem:[%s302 + $0x1b0] sm:$0xff] %v411
                  %v413 = vld [vmem:[%s301 + $0x370] sm:$0xff]
                  %414 = vst [vmem:[%s302 + $0x1b8] sm:$0xff] %v413
                  %v415 = vld [vmem:[%s301 + $0x380] sm:$0xff]
                  %416 = vst [vmem:[%s302 + $0x1c0] sm:$0xff] %v415
                  %v417 = vld [vmem:[%s301 + $0x390] sm:$0xff]
                  %418 = vst [vmem:[%s302 + $0x1c8] sm:$0xff] %v417
                  %v419 = vld [vmem:[%s301 + $0x3a0] sm:$0xff]
                  %420 = vst [vmem:[%s302 + $0x1d0] sm:$0xff] %v419
                  %v421 = vld [vmem:[%s301 + $0x3b0] sm:$0xff]
                  %422 = vst [vmem:[%s302 + $0x1d8] sm:$0xff] %v421
                  %v423 = vld [vmem:[%s301 + $0x3c0] sm:$0xff]
                  %424 = vst [vmem:[%s302 + $0x1e0] sm:$0xff] %v423
                  %v425 = vld [vmem:[%s301 + $0x3d0] sm:$0xff]
                  %426 = vst [vmem:[%s302 + $0x1e8] sm:$0xff] %v425
                  %v427 = vld [vmem:[%s301 + $0x3e0] sm:$0xff]
                  %428 = vst [vmem:[%s302 + $0x1f0] sm:$0xff] %v427
                  %v429 = vld [vmem:[%s301 + $0x3f0] sm:$0xff]
                  %430 = vst [vmem:[%s302 + $0x1f8] sm:$0xff] %v429
                  %v431 = vld [vmem:[%s301 + $0x400] sm:$0xff]
                  %432 = vst [vmem:[%s302 + $0x200] sm:$0xff] %v431
                  %v433 = vld [vmem:[%s301 + $0x410] sm:$0xff]
                  %434 = vst [vmem:[%s302 + $0x208] sm:$0xff] %v433
                  %v435 = vld [vmem:[%s301 + $0x420] sm:$0xff]
                  %436 = vst [vmem:[%s302 + $0x210] sm:$0xff] %v435
                  %v437 = vld [vmem:[%s301 + $0x430] sm:$0xff]
                  %438 = vst [vmem:[%s302 + $0x218] sm:$0xff] %v437
                  %v439 = vld [vmem:[%s301 + $0x440] sm:$0xff]
                  %440 = vst [vmem:[%s302 + $0x220] sm:$0xff] %v439
                  %v441 = vld [vmem:[%s301 + $0x450] sm:$0xff]
                  %442 = vst [vmem:[%s302 + $0x228] sm:$0xff] %v441
                  %v443 = vld [vmem:[%s301 + $0x460] sm:$0xff]
                  %444 = vst [vmem:[%s302 + $0x230] sm:$0xff] %v443
                  %v445 = vld [vmem:[%s301 + $0x470] sm:$0xff]
                  %446 = vst [vmem:[%s302 + $0x238] sm:$0xff] %v445
                $region52: #{tpu_custom_call.1} parent=46 // loop_footer
                  %s300 = sadd.s32 1, %s296
                $region53: #{tpu_custom_call.1} parent=46 // loop_footer_branch
                  %295 = sbr.rel target = $region49
                $region54: #{tpu_custom_call.1} parent=46 // loop_exit
                  _
              $region47: #{tpu_custom_call.1} parent=31 // pred_fallthru
                _
              // Predicated region
              $region55: #{tpu_custom_call.1} parent=31 // pred_check
                _
              $region56: #{tpu_custom_call.1} parent=31 // pred_check_branch
                %448 = sbr.rel target = $region58
              $region57: #{tpu_custom_call.1} parent=31 // pred_region
                _
              $region58: #{tpu_custom_call.1} parent=31 // pred_fallthru
                _
            $region32: #{tpu_custom_call.1} parent=27 // pred_fallthru
              _
            // Predicated region
            $region33: #{tpu_custom_call.1} parent=27 // pred_check
              _
            $region34: #{tpu_custom_call.1} parent=27 // pred_check_branch
              %138 = sbr.rel target = $region36
            $region35: #{tpu_custom_call.1} parent=27 // pred_region
              %s140 = ssub.s32 256, 1
              loop: start=0, step=1, limit=1
              $region37: #{tpu_custom_call.1} parent=35 // loop_pre_header
                _
              $region38: #{tpu_custom_call.1} parent=35 // loop_header
                %s142 = sphi 0, %s146
                %p143 = scmp.ge.s32.totalorder %s142, 1
                %s147 = sphi %s132, %s132
                %s148 = sphi %s128, %s128
              $region39: #{tpu_custom_call.1} parent=35 // loop_header_branch
                %145 = sbr.rel (%p143) target = $region43
              $region40: #{tpu_custom_call.1} parent=35 // loop_body
                %v149 = vld [vmem:[%s147] sm:%s140]
                %150 = vst [vmem:[%s148] sm:%s140] %v149
                %v151 = vld [vmem:[%s147 + $0x10] sm:%s140]
                %152 = vst [vmem:[%s148 + $0x8] sm:%s140] %v151
                %v153 = vld [vmem:[%s147 + $0x20] sm:%s140]
                %154 = vst [vmem:[%s148 + $0x10] sm:%s140] %v153
                %v155 = vld [vmem:[%s147 + $0x30] sm:%s140]
                %156 = vst [vmem:[%s148 + $0x18] sm:%s140] %v155
                %v157 = vld [vmem:[%s147 + $0x40] sm:%s140]
                %158 = vst [vmem:[%s148 + $0x20] sm:%s140] %v157
                %v159 = vld [vmem:[%s147 + $0x50] sm:%s140]
                %160 = vst [vmem:[%s148 + $0x28] sm:%s140] %v159
                %v161 = vld [vmem:[%s147 + $0x60] sm:%s140]
                %162 = vst [vmem:[%s148 + $0x30] sm:%s140] %v161
                %v163 = vld [vmem:[%s147 + $0x70] sm:%s140]
                %164 = vst [vmem:[%s148 + $0x38] sm:%s140] %v163
                %v165 = vld [vmem:[%s147 + $0x80] sm:%s140]
                %166 = vst [vmem:[%s148 + $0x40] sm:%s140] %v165
                %v167 = vld [vmem:[%s147 + $0x90] sm:%s140]
                %168 = vst [vmem:[%s148 + $0x48] sm:%s140] %v167
                %v169 = vld [vmem:[%s147 + $0xa0] sm:%s140]
                %170 = vst [vmem:[%s148 + $0x50] sm:%s140] %v169
                %v171 = vld [vmem:[%s147 + $0xb0] sm:%s140]
                %172 = vst [vmem:[%s148 + $0x58] sm:%s140] %v171
                %v173 = vld [vmem:[%s147 + $0xc0] sm:%s140]
                %174 = vst [vmem:[%s148 + $0x60] sm:%s140] %v173
                %v175 = vld [vmem:[%s147 + $0xd0] sm:%s140]
                %176 = vst [vmem:[%s148 + $0x68] sm:%s140] %v175
                %v177 = vld [vmem:[%s147 + $0xe0] sm:%s140]
                %178 = vst [vmem:[%s148 + $0x70] sm:%s140] %v177
                %v179 = vld [vmem:[%s147 + $0xf0] sm:%s140]
                %180 = vst [vmem:[%s148 + $0x78] sm:%s140] %v179
                %v181 = vld [vmem:[%s147 + $0x100] sm:%s140]
                %182 = vst [vmem:[%s148 + $0x80] sm:%s140] %v181
                %v183 = vld [vmem:[%s147 + $0x110] sm:%s140]
                %184 = vst [vmem:[%s148 + $0x88] sm:%s140] %v183
                %v185 = vld [vmem:[%s147 + $0x120] sm:%s140]
                %186 = vst [vmem:[%s148 + $0x90] sm:%s140] %v185
                %v187 = vld [vmem:[%s147 + $0x130] sm:%s140]
                %188 = vst [vmem:[%s148 + $0x98] sm:%s140] %v187
                %v189 = vld [vmem:[%s147 + $0x140] sm:%s140]
                %190 = vst [vmem:[%s148 + $0xa0] sm:%s140] %v189
                %v191 = vld [vmem:[%s147 + $0x150] sm:%s140]
                %192 = vst [vmem:[%s148 + $0xa8] sm:%s140] %v191
                %v193 = vld [vmem:[%s147 + $0x160] sm:%s140]
                %194 = vst [vmem:[%s148 + $0xb0] sm:%s140] %v193
                %v195 = vld [vmem:[%s147 + $0x170] sm:%s140]
                %196 = vst [vmem:[%s148 + $0xb8] sm:%s140] %v195
                %v197 = vld [vmem:[%s147 + $0x180] sm:%s140]
                %198 = vst [vmem:[%s148 + $0xc0] sm:%s140] %v197
                %v199 = vld [vmem:[%s147 + $0x190] sm:%s140]
                %200 = vst [vmem:[%s148 + $0xc8] sm:%s140] %v199
                %v201 = vld [vmem:[%s147 + $0x1a0] sm:%s140]
                %202 = vst [vmem:[%s148 + $0xd0] sm:%s140] %v201
                %v203 = vld [vmem:[%s147 + $0x1b0] sm:%s140]
                %204 = vst [vmem:[%s148 + $0xd8] sm:%s140] %v203
                %v205 = vld [vmem:[%s147 + $0x1c0] sm:%s140]
                %206 = vst [vmem:[%s148 + $0xe0] sm:%s140] %v205
                %v207 = vld [vmem:[%s147 + $0x1d0] sm:%s140]
                %208 = vst [vmem:[%s148 + $0xe8] sm:%s140] %v207
                %v209 = vld [vmem:[%s147 + $0x1e0] sm:%s140]
                %210 = vst [vmem:[%s148 + $0xf0] sm:%s140] %v209
                %v211 = vld [vmem:[%s147 + $0x1f0] sm:%s140]
                %212 = vst [vmem:[%s148 + $0xf8] sm:%s140] %v211
                %v213 = vld [vmem:[%s147 + $0x200] sm:%s140]
                %214 = vst [vmem:[%s148 + $0x100] sm:%s140] %v213
                %v215 = vld [vmem:[%s147 + $0x210] sm:%s140]
                %216 = vst [vmem:[%s148 + $0x108] sm:%s140] %v215
                %v217 = vld [vmem:[%s147 + $0x220] sm:%s140]
                %218 = vst [vmem:[%s148 + $0x110] sm:%s140] %v217
                %v219 = vld [vmem:[%s147 + $0x230] sm:%s140]
                %220 = vst [vmem:[%s148 + $0x118] sm:%s140] %v219
                %v221 = vld [vmem:[%s147 + $0x240] sm:%s140]
                %222 = vst [vmem:[%s148 + $0x120] sm:%s140] %v221
                %v223 = vld [vmem:[%s147 + $0x250] sm:%s140]
                %224 = vst [vmem:[%s148 + $0x128] sm:%s140] %v223
                %v225 = vld [vmem:[%s147 + $0x260] sm:%s140]
                %226 = vst [vmem:[%s148 + $0x130] sm:%s140] %v225
                %v227 = vld [vmem:[%s147 + $0x270] sm:%s140]
                %228 = vst [vmem:[%s148 + $0x138] sm:%s140] %v227
                %v229 = vld [vmem:[%s147 + $0x280] sm:%s140]
                %230 = vst [vmem:[%s148 + $0x140] sm:%s140] %v229
                %v231 = vld [vmem:[%s147 + $0x290] sm:%s140]
                %232 = vst [vmem:[%s148 + $0x148] sm:%s140] %v231
                %v233 = vld [vmem:[%s147 + $0x2a0] sm:%s140]
                %234 = vst [vmem:[%s148 + $0x150] sm:%s140] %v233
                %v235 = vld [vmem:[%s147 + $0x2b0] sm:%s140]
                %236 = vst [vmem:[%s148 + $0x158] sm:%s140] %v235
                %v237 = vld [vmem:[%s147 + $0x2c0] sm:%s140]
                %238 = vst [vmem:[%s148 + $0x160] sm:%s140] %v237
                %v239 = vld [vmem:[%s147 + $0x2d0] sm:%s140]
                %240 = vst [vmem:[%s148 + $0x168] sm:%s140] %v239
                %v241 = vld [vmem:[%s147 + $0x2e0] sm:%s140]
                %242 = vst [vmem:[%s148 + $0x170] sm:%s140] %v241
                %v243 = vld [vmem:[%s147 + $0x2f0] sm:%s140]
                %244 = vst [vmem:[%s148 + $0x178] sm:%s140] %v243
                %v245 = vld [vmem:[%s147 + $0x300] sm:%s140]
                %246 = vst [vmem:[%s148 + $0x180] sm:%s140] %v245
                %v247 = vld [vmem:[%s147 + $0x310] sm:%s140]
                %248 = vst [vmem:[%s148 + $0x188] sm:%s140] %v247
                %v249 = vld [vmem:[%s147 + $0x320] sm:%s140]
                %250 = vst [vmem:[%s148 + $0x190] sm:%s140] %v249
                %v251 = vld [vmem:[%s147 + $0x330] sm:%s140]
                %252 = vst [vmem:[%s148 + $0x198] sm:%s140] %v251
                %v253 = vld [vmem:[%s147 + $0x340] sm:%s140]
                %254 = vst [vmem:[%s148 + $0x1a0] sm:%s140] %v253
                %v255 = vld [vmem:[%s147 + $0x350] sm:%s140]
                %256 = vst [vmem:[%s148 + $0x1a8] sm:%s140] %v255
                %v257 = vld [vmem:[%s147 + $0x360] sm:%s140]
                %258 = vst [vmem:[%s148 + $0x1b0] sm:%s140] %v257
                %v259 = vld [vmem:[%s147 + $0x370] sm:%s140]
                %260 = vst [vmem:[%s148 + $0x1b8] sm:%s140] %v259
                %v261 = vld [vmem:[%s147 + $0x380] sm:%s140]
                %262 = vst [vmem:[%s148 + $0x1c0] sm:%s140] %v261
                %v263 = vld [vmem:[%s147 + $0x390] sm:%s140]
                %264 = vst [vmem:[%s148 + $0x1c8] sm:%s140] %v263
                %v265 = vld [vmem:[%s147 + $0x3a0] sm:%s140]
                %266 = vst [vmem:[%s148 + $0x1d0] sm:%s140] %v265
                %v267 = vld [vmem:[%s147 + $0x3b0] sm:%s140]
                %268 = vst [vmem:[%s148 + $0x1d8] sm:%s140] %v267
                %v269 = vld [vmem:[%s147 + $0x3c0] sm:%s140]
                %270 = vst [vmem:[%s148 + $0x1e0] sm:%s140] %v269
                %v271 = vld [vmem:[%s147 + $0x3d0] sm:%s140]
                %272 = vst [vmem:[%s148 + $0x1e8] sm:%s140] %v271
                %v273 = vld [vmem:[%s147 + $0x3e0] sm:%s140]
                %274 = vst [vmem:[%s148 + $0x1f0] sm:%s140] %v273
                %v275 = vld [vmem:[%s147 + $0x3f0] sm:%s140]
                %276 = vst [vmem:[%s148 + $0x1f8] sm:%s140] %v275
                %v277 = vld [vmem:[%s147 + $0x400] sm:%s140]
                %278 = vst [vmem:[%s148 + $0x200] sm:%s140] %v277
                %v279 = vld [vmem:[%s147 + $0x410] sm:%s140]
                %280 = vst [vmem:[%s148 + $0x208] sm:%s140] %v279
                %v281 = vld [vmem:[%s147 + $0x420] sm:%s140]
                %282 = vst [vmem:[%s148 + $0x210] sm:%s140] %v281
                %v283 = vld [vmem:[%s147 + $0x430] sm:%s140]
                %284 = vst [vmem:[%s148 + $0x218] sm:%s140] %v283
                %v285 = vld [vmem:[%s147 + $0x440] sm:%s140]
                %286 = vst [vmem:[%s148 + $0x220] sm:%s140] %v285
                %v287 = vld [vmem:[%s147 + $0x450] sm:%s140]
                %288 = vst [vmem:[%s148 + $0x228] sm:%s140] %v287
                %v289 = vld [vmem:[%s147 + $0x460] sm:%s140]
                %290 = vst [vmem:[%s148 + $0x230] sm:%s140] %v289
                %v291 = vld [vmem:[%s147 + $0x470] sm:%s140]
                %292 = vst [vmem:[%s148 + $0x238] sm:%s140] %v291
              $region41: #{tpu_custom_call.1} parent=35 // loop_footer
                %s146 = sadd.s32 1, %s142
              $region42: #{tpu_custom_call.1} parent=35 // loop_footer_branch
                %141 = sbr.rel target = $region38
              $region43: #{tpu_custom_call.1} parent=35 // loop_exit
                _
            $region36: #{tpu_custom_call.1} parent=27 // pred_fallthru
              _
          $region28: #{tpu_custom_call.1} parent=23 // pred_fallthru
            _
          %449 = vnop
        $region24: #{tpu_custom_call.1} parent=19 // pred_fallthru
          _
      $region20: #{tpu_custom_call.1} parent=5 // pred_fallthru
        _
      %p450 = scmp.le.s32.totalorder 1, %s11
      %p451 = scmp.lt.s32.totalorder %s11, 3
      %p452 = pnand %p450, %p451
      %p453 = pneg %p452
      // Predicated region
      $region59: #{tpu_custom_call.1} parent=5 // pred_check
        _
      $region60: #{tpu_custom_call.1} parent=5 // pred_check_branch
        %455 = sbr.rel (%p452) target = $region62
      $region61: #{tpu_custom_call.1} parent=5 // pred_region
        %s456 = ssub.s32 %s11, 1
        %s457 = sand.u32 %s59, 1
        %s458 = sand.u32 %s59, 1
        %s459 = smul.addr %s458, 576
        %s460 = scalar_lea.vmem [#allocation2], %s459
        // Predicated region
        $region63: #{tpu_custom_call.1} parent=61 // pred_check
          %p461 = pneg %p72
        $region64: #{tpu_custom_call.1} parent=61 // pred_check_branch
          %463 = sbr.rel (%p461) target = $region66
        $region65: #{tpu_custom_call.1} parent=61 // pred_region
          _
        $region66: #{tpu_custom_call.1} parent=61 // pred_fallthru
          _
        %p464 = pneg %p44
        %p465 = pneg %p41
        %s466 = sand.u32 %s59, 1
        %s467 = sand.u32 %s59, 1
        %s468 = smul.addr %s467, 576
        %s469 = scalar_lea.vmem [#allocation2], %s468
        %p470 = pneg %p72
        %p471 = pneg %p69
        %p472 = pneg %p100
        %p473 = pneg %p97
        %s474 = sand.u32 %s87, 1
        %s475 = scalar_lea.sflag [#allocation4], %s474
        %s476 = sand.u32 %s87, 1
        %s477 = smul.addr %s476, 96
        %s478 = scalar_lea.vmem [#allocation3], %s477
        %v480 = vld [vmem:[%s0] sm:$0xff]
        %v481 = vld [vmem:[%s0 + $0x8] sm:$0xff]
        %v482 = vld [vmem:[%s0 + $0x10] sm:$0xff]
        %v483 = vld [vmem:[%s0 + $0x18] sm:$0xff]
        %v484 = vld [vmem:[%s0 + $0x20] sm:$0xff]
        %v485 = vld [vmem:[%s0 + $0x28] sm:$0xff]
        %v486 = vld [vmem:[%s0 + $0x30] sm:$0xff]
        %v487 = vld [vmem:[%s0 + $0x38] sm:$0xff]
        %v488 = vld [vmem:[%s0 + $0x40] sm:$0xff]
        %v489 = vld [vmem:[%s0 + $0x48] sm:$0xff]
        %v490 = vld [vmem:[%s0 + $0x50] sm:$0xff]
        %v491 = vld [vmem:[%s0 + $0x58] sm:$0xff]
        %v492 = vld [vmem:[%s0 + $0x60] sm:$0xff]
        %v493 = vld [vmem:[%s0 + $0x68] sm:$0xff]
        %v494 = vld [vmem:[%s0 + $0x70] sm:$0xff]
        %v495 = vld [vmem:[%s0 + $0x78] sm:$0xff]
        %v496 = vld [vmem:[%s0 + $0x80] sm:$0xff]
        %v497 = vld [vmem:[%s0 + $0x88] sm:$0xff]
        %v498 = vld [vmem:[%s0 + $0x90] sm:$0xff]
        %v499 = vld [vmem:[%s0 + $0x98] sm:$0xff]
        %v500 = vld [vmem:[%s0 + $0xa0] sm:$0xff]
        %v501 = vld [vmem:[%s0 + $0xa8] sm:$0xff]
        %v502 = vld [vmem:[%s0 + $0xb0] sm:$0xff]
        %v503 = vld [vmem:[%s0 + $0xb8] sm:$0xff]
        %v504 = vld [vmem:[%s0 + $0xc0] sm:$0xff]
        %v505 = vld [vmem:[%s0 + $0xc8] sm:$0xff]
        %v506 = vld [vmem:[%s0 + $0xd0] sm:$0xff]
        %v507 = vld [vmem:[%s0 + $0xd8] sm:$0xff]
        %v508 = vld [vmem:[%s0 + $0xe0] sm:$0xff]
        %v509 = vld [vmem:[%s0 + $0xe8] sm:$0xff]
        %v510 = vld [vmem:[%s0 + $0xf0] sm:$0xff]
        %v511 = vld [vmem:[%s0 + $0xf8] sm:$0xff]
        %v512 = vld [vmem:[%s0 + $0x100] sm:$0xff]
        %v513 = vld [vmem:[%s0 + $0x108] sm:$0xff]
        %v514 = vld [vmem:[%s0 + $0x110] sm:$0xff]
        %v515 = vld [vmem:[%s0 + $0x118] sm:$0xff]
        %v516 = vld [vmem:[%s0 + $0x120] sm:$0xff]
        %v517 = vld [vmem:[%s0 + $0x128] sm:$0xff]
        %v518 = vld [vmem:[%s0 + $0x130] sm:$0xff]
        %v519 = vld [vmem:[%s0 + $0x138] sm:$0xff]
        %v520 = vld [vmem:[%s0 + $0x140] sm:$0xff]
        %v521 = vld [vmem:[%s0 + $0x148] sm:$0xff]
        %v522 = vld [vmem:[%s0 + $0x150] sm:$0xff]
        %v523 = vld [vmem:[%s0 + $0x158] sm:$0xff]
        %v524 = vld [vmem:[%s0 + $0x160] sm:$0xff]
        %v525 = vld [vmem:[%s0 + $0x168] sm:$0xff]
        %v526 = vld [vmem:[%s0 + $0x170] sm:$0xff]
        %v527 = vld [vmem:[%s0 + $0x178] sm:$0xff]
        %v528 = vld [vmem:[%s0 + $0x180] sm:$0xff]
        %v529 = vld [vmem:[%s0 + $0x188] sm:$0xff]
        %v530 = vld [vmem:[%s0 + $0x190] sm:$0xff]
        %v531 = vld [vmem:[%s0 + $0x198] sm:$0xff]
        %v532 = vld [vmem:[%s0 + $0x1a0] sm:$0xff]
        %v533 = vld [vmem:[%s0 + $0x1a8] sm:$0xff]
        %v534 = vld [vmem:[%s0 + $0x1b0] sm:$0xff]
        %v535 = vld [vmem:[%s0 + $0x1b8] sm:$0xff]
        %v536 = vld [vmem:[%s0 + $0x1c0] sm:$0xff]
        %v537 = vld [vmem:[%s0 + $0x1c8] sm:$0xff]
        %v538 = vld [vmem:[%s0 + $0x1d0] sm:$0xff]
        %v539 = vld [vmem:[%s0 + $0x1d8] sm:$0xff]
        %v540 = vld [vmem:[%s460] sm:$0xff]
        %v541 = vld [vmem:[%s460 + $0x8] sm:$0xff]
        %v542 = vld [vmem:[%s460 + $0x10] sm:$0xff]
        %v543 = vld [vmem:[%s460 + $0x18] sm:$0xff]
        %v544 = vld [vmem:[%s460 + $0x20] sm:$0xff]
        %v545 = vld [vmem:[%s460 + $0x28] sm:$0xff]
        %v546 = vld [vmem:[%s460 + $0x30] sm:$0xff]
        %v547 = vld [vmem:[%s460 + $0x38] sm:$0xff]
        %v548 = vld [vmem:[%s460 + $0x40] sm:$0xff]
        %v549 = vld [vmem:[%s460 + $0x48] sm:$0xff]
        %v550 = vld [vmem:[%s460 + $0x50] sm:$0xff]
        %v551 = vld [vmem:[%s460 + $0x58] sm:$0xff]
        %v552 = vld [vmem:[%s460 + $0x60] sm:$0xff]
        %v553 = vld [vmem:[%s460 + $0x68] sm:$0xff]
        %v554 = vld [vmem:[%s460 + $0x70] sm:$0xff]
        %v555 = vld [vmem:[%s460 + $0x78] sm:$0xff]
        %v556 = vld [vmem:[%s460 + $0x80] sm:$0xff]
        %v557 = vld [vmem:[%s460 + $0x88] sm:$0xff]
        %v558 = vld [vmem:[%s460 + $0x90] sm:$0xff]
        %v559 = vld [vmem:[%s460 + $0x98] sm:$0xff]
        %v560 = vld [vmem:[%s460 + $0xa0] sm:$0xff]
        %v561 = vld [vmem:[%s460 + $0xa8] sm:$0xff]
        %v562 = vld [vmem:[%s460 + $0xb0] sm:$0xff]
        %v563 = vld [vmem:[%s460 + $0xb8] sm:$0xff]
        %v564 = vld [vmem:[%s460 + $0xc0] sm:$0xff]
        %v565 = vld [vmem:[%s460 + $0xc8] sm:$0xff]
        %v566 = vld [vmem:[%s460 + $0xd0] sm:$0xff]
        %v567 = vld [vmem:[%s460 + $0xd8] sm:$0xff]
        %v568 = vld [vmem:[%s460 + $0xe0] sm:$0xff]
        %v569 = vld [vmem:[%s460 + $0xe8] sm:$0xff]
        %v570 = vld [vmem:[%s460 + $0xf0] sm:$0xff]
        %v571 = vld [vmem:[%s460 + $0xf8] sm:$0xff]
        %v572 = vld [vmem:[%s460 + $0x100] sm:$0xff]
        %v573 = vld [vmem:[%s460 + $0x108] sm:$0xff]
        %v574 = vld [vmem:[%s460 + $0x110] sm:$0xff]
        %v575 = vld [vmem:[%s460 + $0x118] sm:$0xff]
        %v576 = vld [vmem:[%s460 + $0x120] sm:$0xff]
        %v577 = vld [vmem:[%s460 + $0x128] sm:$0xff]
        %v578 = vld [vmem:[%s460 + $0x130] sm:$0xff]
        %v579 = vld [vmem:[%s460 + $0x138] sm:$0xff]
        %v580 = vld [vmem:[%s460 + $0x140] sm:$0xff]
        %v581 = vld [vmem:[%s460 + $0x148] sm:$0xff]
        %v582 = vld [vmem:[%s460 + $0x150] sm:$0xff]
        %v583 = vld [vmem:[%s460 + $0x158] sm:$0xff]
        %v584 = vld [vmem:[%s460 + $0x160] sm:$0xff]
        %v585 = vld [vmem:[%s460 + $0x168] sm:$0xff]
        %v586 = vld [vmem:[%s460 + $0x170] sm:$0xff]
        %v587 = vld [vmem:[%s460 + $0x178] sm:$0xff]
        %v588 = vld [vmem:[%s460 + $0x180] sm:$0xff]
        %v589 = vld [vmem:[%s460 + $0x188] sm:$0xff]
        %v590 = vld [vmem:[%s460 + $0x190] sm:$0xff]
        %v591 = vld [vmem:[%s460 + $0x198] sm:$0xff]
        %v592 = vld [vmem:[%s460 + $0x1a0] sm:$0xff]
        %v593 = vld [vmem:[%s460 + $0x1a8] sm:$0xff]
        %v594 = vld [vmem:[%s460 + $0x1b0] sm:$0xff]
        %v595 = vld [vmem:[%s460 + $0x1b8] sm:$0xff]
        %v596 = vld [vmem:[%s460 + $0x1c0] sm:$0xff]
        %v597 = vld [vmem:[%s460 + $0x1c8] sm:$0xff]
        %v598 = vld [vmem:[%s460 + $0x1d0] sm:$0xff]
        %v599 = vld [vmem:[%s460 + $0x1d8] sm:$0xff]
        %v600 = vld [vmem:[%s460 + $0x1e0] sm:$0xff]
        %v601 = vld [vmem:[%s460 + $0x1e8] sm:$0xff]
        %v602 = vld [vmem:[%s460 + $0x1f0] sm:$0xff]
        %v603 = vld [vmem:[%s460 + $0x1f8] sm:$0xff]
        %v604 = vld [vmem:[%s460 + $0x200] sm:$0xff]
        %v605 = vld [vmem:[%s460 + $0x208] sm:$0xff]
        %v606 = vld [vmem:[%s460 + $0x210] sm:$0xff]
        %v607 = vld [vmem:[%s460 + $0x218] sm:$0xff]
        %v608 = vld [vmem:[%s460 + $0x220] sm:$0xff]
        %v609 = vld [vmem:[%s460 + $0x228] sm:$0xff]
        %v610 = vld [vmem:[%s460 + $0x230] sm:$0xff]
        %v611 = vld [vmem:[%s460 + $0x238] sm:$0xff]
        %v612 = vpack.c.bf16 %v485, %v480
        %v613 = vpack.c.bf16 %v486, %v481
        %v614 = vpack.c.bf16 %v487, %v482
        %v615 = vpack.c.bf16 %v488, %v483
        %v616 = vpack.c.bf16 %v489, %v484
        %v617 = vpack.c.bf16 %v495, %v490
        %v618 = vpack.c.bf16 %v496, %v491
        %v619 = vpack.c.bf16 %v497, %v492
        %v620 = vpack.c.bf16 %v498, %v493
        %v621 = vpack.c.bf16 %v499, %v494
        %v622 = vpack.c.bf16 %v505, %v500
        %v623 = vpack.c.bf16 %v506, %v501
        %v624 = vpack.c.bf16 %v507, %v502
        %v625 = vpack.c.bf16 %v508, %v503
        %v626 = vpack.c.bf16 %v509, %v504
        %v627 = vpack.c.bf16 %v515, %v510
        %v628 = vpack.c.bf16 %v516, %v511
        %v629 = vpack.c.bf16 %v517, %v512
        %v630 = vpack.c.bf16 %v518, %v513
        %v631 = vpack.c.bf16 %v519, %v514
        %v632 = vpack.c.bf16 %v525, %v520
        %v633 = vpack.c.bf16 %v526, %v521
        %v634 = vpack.c.bf16 %v527, %v522
        %v635 = vpack.c.bf16 %v528, %v523
        %v636 = vpack.c.bf16 %v529, %v524
        %v637 = vpack.c.bf16 %v535, %v530
        %v638 = vpack.c.bf16 %v536, %v531
        %v639 = vpack.c.bf16 %v537, %v532
        %v640 = vpack.c.bf16 %v538, %v533
        %v641 = vpack.c.bf16 %v539, %v534
        %v642 = vpack.c.bf16 %v541, %v540
        %v643 = vpack.c.bf16 %v543, %v542
        %v644 = vpack.c.bf16 %v545, %v544
        %v645 = vpack.c.bf16 %v547, %v546
        %v646 = vpack.c.bf16 %v549, %v548
        %v647 = vpack.c.bf16 %v551, %v550
        %v648 = vpack.c.bf16 %v553, %v552
        %v649 = vpack.c.bf16 %v555, %v554
        %v650 = vpack.c.bf16 %v557, %v556
        %v651 = vpack.c.bf16 %v559, %v558
        %v652 = vpack.c.bf16 %v561, %v560
        %v653 = vpack.c.bf16 %v563, %v562
        %v654 = vpack.c.bf16 %v565, %v564
        %v655 = vpack.c.bf16 %v567, %v566
        %v656 = vpack.c.bf16 %v569, %v568
        %v657 = vpack.c.bf16 %v571, %v570
        %v658 = vpack.c.bf16 %v573, %v572
        %v659 = vpack.c.bf16 %v575, %v574
        %v660 = vpack.c.bf16 %v577, %v576
        %v661 = vpack.c.bf16 %v579, %v578
        %v662 = vpack.c.bf16 %v581, %v580
        %v663 = vpack.c.bf16 %v583, %v582
        %v664 = vpack.c.bf16 %v585, %v584
        %v665 = vpack.c.bf16 %v587, %v586
        %v666 = vpack.c.bf16 %v589, %v588
        %v667 = vpack.c.bf16 %v591, %v590
        %v668 = vpack.c.bf16 %v593, %v592
        %v669 = vpack.c.bf16 %v595, %v594
        %v670 = vpack.c.bf16 %v597, %v596
        %v671 = vpack.c.bf16 %v599, %v598
        %v672 = vpack.c.bf16 %v601, %v600
        %v673 = vpack.c.bf16 %v603, %v602
        %v674 = vpack.c.bf16 %v605, %v604
        %v675 = vpack.c.bf16 %v607, %v606
        %v676 = vpack.c.bf16 %v609, %v608
        %v677 = vpack.c.bf16 %v611, %v610
        %vm678 = vcmask 523264
        %v680 = vsel %vm678, %v616, 0
        %v683 = vsel %vm678, %v621, 0
        %v686 = vsel %vm678, %v626, 0
        %v689 = vsel %vm678, %v631, 0
        %v692 = vsel %vm678, %v636, 0
        %v695 = vsel %vm678, %v641, 0
        %697 = vmatpush.bf16.msra.mxu0 %v649
        %698 = vmatpush.bf16.msra.mxu0 %v648
        %699 = vmatpush.bf16.msra.mxu0 %v647
        %700 = vmatpush.bf16.msra.mxu0 %v646
        %701 = vmatpush.bf16.msra.mxu0 %v645
        %702 = vmatpush.bf16.msra.mxu0 %v644
        %703 = vmatpush.bf16.msra.mxu0 %v643
        %704 = vmatpush.bf16.msra.mxu0 %v642
        %705 = vmatmul.bf16.gmra.mxu0 %v612
        %v706 = vpop.f32.mrf.mxu0
        %v707 = vadd.f32 0.0, %v706
        %v708 = vpop.f32.mrf.mxu0
        %v709 = vadd.f32 0.0, %v708
        %710 = vmatmul.bf16.gmra.mxu0 %v617
        %v711 = vpop.f32.mrf.mxu0
        %v712 = vadd.f32 0.0, %v711
        %v713 = vpop.f32.mrf.mxu0
        %v714 = vadd.f32 0.0, %v713
        %715 = vmatmul.bf16.gmra.mxu0 %v622
        %v716 = vpop.f32.mrf.mxu0
        %v717 = vadd.f32 0.0, %v716
        %v718 = vpop.f32.mrf.mxu0
        %v719 = vadd.f32 0.0, %v718
        %720 = vmatmul.bf16.gmra.mxu0 %v627
        %v721 = vpop.f32.mrf.mxu0
        %v722 = vadd.f32 0.0, %v721
        %v723 = vpop.f32.mrf.mxu0
        %v724 = vadd.f32 0.0, %v723
        %725 = vmatmul.bf16.gmra.mxu0 %v632
        %v726 = vpop.f32.mrf.mxu0
        %v727 = vadd.f32 0.0, %v726
        %v728 = vpop.f32.mrf.mxu0
        %v729 = vadd.f32 0.0, %v728
        %730 = vmatmul.bf16.gmra.mxu0 %v637
        %v731 = vpop.f32.mrf.mxu0
        %v732 = vadd.f32 0.0, %v731
        %v733 = vpop.f32.mrf.mxu0
        %v734 = vadd.f32 0.0, %v733
        %735 = vdwg.mxu0
        %736 = vmatpush.bf16.msra.mxu0 %v657
        %737 = vmatpush.bf16.msra.mxu0 %v656
        %738 = vmatpush.bf16.msra.mxu0 %v655
        %739 = vmatpush.bf16.msra.mxu0 %v654
        %740 = vmatpush.bf16.msra.mxu0 %v653
        %741 = vmatpush.bf16.msra.mxu0 %v652
        %742 = vmatpush.bf16.msra.mxu0 %v651
        %743 = vmatpush.bf16.msra.mxu0 %v650
        %744 = vmatmul.bf16.gmra.mxu0 %v613
        %v745 = vpop.f32.mrf.mxu0
        %v746 = vadd.f32 %v707, %v745
        %v747 = vpop.f32.mrf.mxu0
        %v748 = vadd.f32 %v709, %v747
        %749 = vmatmul.bf16.gmra.mxu0 %v618
        %v750 = vpop.f32.mrf.mxu0
        %v751 = vadd.f32 %v712, %v750
        %v752 = vpop.f32.mrf.mxu0
        %v753 = vadd.f32 %v714, %v752
        %754 = vmatmul.bf16.gmra.mxu0 %v623
        %v755 = vpop.f32.mrf.mxu0
        %v756 = vadd.f32 %v717, %v755
        %v757 = vpop.f32.mrf.mxu0
        %v758 = vadd.f32 %v719, %v757
        %759 = vmatmul.bf16.gmra.mxu0 %v628
        %v760 = vpop.f32.mrf.mxu0
        %v761 = vadd.f32 %v722, %v760
        %v762 = vpop.f32.mrf.mxu0
        %v763 = vadd.f32 %v724, %v762
        %764 = vmatmul.bf16.gmra.mxu0 %v633
        %v765 = vpop.f32.mrf.mxu0
        %v766 = vadd.f32 %v727, %v765
        %v767 = vpop.f32.mrf.mxu0
        %v768 = vadd.f32 %v729, %v767
        %769 = vmatmul.bf16.gmra.mxu0 %v638
        %v770 = vpop.f32.mrf.mxu0
        %v771 = vadd.f32 %v732, %v770
        %v772 = vpop.f32.mrf.mxu0
        %v773 = vadd.f32 %v734, %v772
        %774 = vdwg.mxu0
        %775 = vmatpush.bf16.msra.mxu0 %v665
        %776 = vmatpush.bf16.msra.mxu0 %v664
        %777 = vmatpush.bf16.msra.mxu0 %v663
        %778 = vmatpush.bf16.msra.mxu0 %v662
        %779 = vmatpush.bf16.msra.mxu0 %v661
        %780 = vmatpush.bf16.msra.mxu0 %v660
        %781 = vmatpush.bf16.msra.mxu0 %v659
        %782 = vmatpush.bf16.msra.mxu0 %v658
        %783 = vmatmul.bf16.gmra.mxu0 %v614
        %v784 = vpop.f32.mrf.mxu0
        %v785 = vadd.f32 %v746, %v784
        %v786 = vpop.f32.mrf.mxu0
        %v787 = vadd.f32 %v748, %v786
        %788 = vmatmul.bf16.gmra.mxu0 %v619
        %v789 = vpop.f32.mrf.mxu0
        %v790 = vadd.f32 %v751, %v789
        %v791 = vpop.f32.mrf.mxu0
        %v792 = vadd.f32 %v753, %v791
        %793 = vmatmul.bf16.gmra.mxu0 %v624
        %v794 = vpop.f32.mrf.mxu0
        %v795 = vadd.f32 %v756, %v794
        %v796 = vpop.f32.mrf.mxu0
        %v797 = vadd.f32 %v758, %v796
        %798 = vmatmul.bf16.gmra.mxu0 %v629
        %v799 = vpop.f32.mrf.mxu0
        %v800 = vadd.f32 %v761, %v799
        %v801 = vpop.f32.mrf.mxu0
        %v802 = vadd.f32 %v763, %v801
        %803 = vmatmul.bf16.gmra.mxu0 %v634
        %v804 = vpop.f32.mrf.mxu0
        %v805 = vadd.f32 %v766, %v804
        %v806 = vpop.f32.mrf.mxu0
        %v807 = vadd.f32 %v768, %v806
        %808 = vmatmul.bf16.gmra.mxu0 %v639
        %v809 = vpop.f32.mrf.mxu0
        %v810 = vadd.f32 %v771, %v809
        %v811 = vpop.f32.mrf.mxu0
        %v812 = vadd.f32 %v773, %v811
        %813 = vdwg.mxu0
        %814 = vmatpush.bf16.msra.mxu0 %v673
        %815 = vmatpush.bf16.msra.mxu0 %v672
        %816 = vmatpush.bf16.msra.mxu0 %v671
        %817 = vmatpush.bf16.msra.mxu0 %v670
        %818 = vmatpush.bf16.msra.mxu0 %v669
        %819 = vmatpush.bf16.msra.mxu0 %v668
        %820 = vmatpush.bf16.msra.mxu0 %v667
        %821 = vmatpush.bf16.msra.mxu0 %v666
        %822 = vmatmul.bf16.gmra.mxu0 %v615
        %v823 = vpop.f32.mrf.mxu0
        %v824 = vadd.f32 %v785, %v823
        %v825 = vpop.f32.mrf.mxu0
        %v826 = vadd.f32 %v787, %v825
        %827 = vmatmul.bf16.gmra.mxu0 %v620
        %v828 = vpop.f32.mrf.mxu0
        %v829 = vadd.f32 %v790, %v828
        %v830 = vpop.f32.mrf.mxu0
        %v831 = vadd.f32 %v792, %v830
        %832 = vmatmul.bf16.gmra.mxu0 %v625
        %v833 = vpop.f32.mrf.mxu0
        %v834 = vadd.f32 %v795, %v833
        %v835 = vpop.f32.mrf.mxu0
        %v836 = vadd.f32 %v797, %v835
        %837 = vmatmul.bf16.gmra.mxu0 %v630
        %v838 = vpop.f32.mrf.mxu0
        %v839 = vadd.f32 %v800, %v838
        %v840 = vpop.f32.mrf.mxu0
        %v841 = vadd.f32 %v802, %v840
        %842 = vmatmul.bf16.gmra.mxu0 %v635
        %v843 = vpop.f32.mrf.mxu0
        %v844 = vadd.f32 %v805, %v843
        %v845 = vpop.f32.mrf.mxu0
        %v846 = vadd.f32 %v807, %v845
        %847 = vmatmul.bf16.gmra.mxu0 %v640
        %v848 = vpop.f32.mrf.mxu0
        %v849 = vadd.f32 %v810, %v848
        %v850 = vpop.f32.mrf.mxu0
        %v851 = vadd.f32 %v812, %v850
        %852 = vdwg.mxu0
        %853 = vmatpush.bf16.msra.mxu0 0
        %854 = vmatpush.bf16.msra.mxu0 0
        %855 = vmatpush.bf16.msra.mxu0 0
        %856 = vmatpush.bf16.msra.mxu0 0
        %857 = vmatpush.bf16.msra.mxu0 %v677
        %858 = vmatpush.bf16.msra.mxu0 %v676
        %859 = vmatpush.bf16.msra.mxu0 %v675
        %860 = vmatpush.bf16.msra.mxu0 %v674
        %861 = vmatmul.bf16.gmra.mxu0 %v680
        %v862 = vpop.f32.mrf.mxu0
        %v863 = vadd.f32 %v824, %v862
        %v864 = vpop.f32.mrf.mxu0
        %v865 = vadd.f32 %v826, %v864
        %866 = vmatmul.bf16.gmra.mxu0 %v683
        %v867 = vpop.f32.mrf.mxu0
        %v868 = vadd.f32 %v829, %v867
        %v869 = vpop.f32.mrf.mxu0
        %v870 = vadd.f32 %v831, %v869
        %871 = vmatmul.bf16.gmra.mxu0 %v686
        %v872 = vpop.f32.mrf.mxu0
        %v873 = vadd.f32 %v834, %v872
        %v874 = vpop.f32.mrf.mxu0
        %v875 = vadd.f32 %v836, %v874
        %876 = vmatmul.bf16.gmra.mxu0 %v689
        %v877 = vpop.f32.mrf.mxu0
        %v878 = vadd.f32 %v839, %v877
        %v879 = vpop.f32.mrf.mxu0
        %v880 = vadd.f32 %v841, %v879
        %881 = vmatmul.bf16.gmra.mxu0 %v692
        %v882 = vpop.f32.mrf.mxu0
        %v883 = vadd.f32 %v844, %v882
        %v884 = vpop.f32.mrf.mxu0
        %v885 = vadd.f32 %v846, %v884
        %886 = vmatmul.bf16.gmra.mxu0 %v695
        %v887 = vpop.f32.mrf.mxu0
        %v888 = vadd.f32 %v849, %v887
        %v889 = vpop.f32.mrf.mxu0
        %v890 = vadd.f32 %v851, %v889
        %891 = vdwg.mxu0
        %892 = vst [vmem:[%s478] sm:$0xff] %v863
        %893 = vst [vmem:[%s478 + $0x8] sm:$0xff] %v865
        %894 = vst [vmem:[%s478 + $0x10] sm:$0xff] %v868
        %895 = vst [vmem:[%s478 + $0x18] sm:$0xff] %v870
        %896 = vst [vmem:[%s478 + $0x20] sm:$0xff] %v873
        %897 = vst [vmem:[%s478 + $0x28] sm:$0xff] %v875
        %898 = vst [vmem:[%s478 + $0x30] sm:$0xff] %v878
        %899 = vst [vmem:[%s478 + $0x38] sm:$0xff] %v880
        %900 = vst [vmem:[%s478 + $0x40] sm:$0xff] %v883
        %901 = vst [vmem:[%s478 + $0x48] sm:$0xff] %v885
        %902 = vst [vmem:[%s478 + $0x50] sm:$0xff] %v888
        %903 = vst [vmem:[%s478 + $0x58] sm:$0xff] %v890
        %s904 = sand.u32 %s87, 1
        %s905 = scalar_lea.sflag [#allocation4], %s904
        %s906 = sand.u32 %s87, 1
        %s907 = smul.addr %s906, 96
        %s908 = scalar_lea.vmem [#allocation3], %s907
        // Predicated region
        $region67: #{tpu_custom_call.1} parent=61 // pred_check
          %p909 = pneg %p97
        $region68: #{tpu_custom_call.1} parent=61 // pred_check_branch
          %911 = sbr.rel (%p909) target = $region70
        $region69: #{tpu_custom_call.1} parent=61 // pred_region
          %913 = vsyncadd %s905, 0
          %s914 = smul.addr %s20, 24
          %s915 = sadd.s32 %s21, %s914
          %s916 = smul.addr %s915, 8
          %s917 = scalar_lea.hbm %s2, %s916
          %s918 = sshll.u32 %s908, 4
          %s919 = int_to_ptr.vmem [resolvable:$true] %s918
          %s920 = sshll.u32 %s917, 4
          %s921 = int_to_ptr.hbm [resolvable:$true] %s920
          %926 = dma.vmem_to_hbm [thread:$0]  %s919, 1536, %s921, %s905, 128, 256, 8
        $region70: #{tpu_custom_call.1} parent=61 // pred_fallthru
          _
      $region62: #{tpu_custom_call.1} parent=5 // pred_fallthru
        _
      %p927 = scmp.le.s32.totalorder 2, %s11
      // Predicated region
      $region71: #{tpu_custom_call.1} parent=5 // pred_check
        %p928 = pneg %p927
      $region72: #{tpu_custom_call.1} parent=5 // pred_check_branch
        %930 = sbr.rel (%p928) target = $region74
      $region73: #{tpu_custom_call.1} parent=5 // pred_region
        %s931 = ssub.s32 %s11, 2
        // Predicated region
        $region75: #{tpu_custom_call.1} parent=73 // pred_check
          %p932 = pneg %p103
        $region76: #{tpu_custom_call.1} parent=73 // pred_check_branch
          %934 = sbr.rel (%p932) target = $region78
        $region77: #{tpu_custom_call.1} parent=73 // pred_region
          %s935 = sand.u32 %s88, 1
          %s936 = scalar_lea.sflag [#allocation4], %s935
          %s937 = sand.u32 %s88, 1
          %s938 = smul.addr %s937, 96
          %s939 = scalar_lea.vmem [#allocation3], %s938
          %941 = dma.done %s936, 1536
        $region78: #{tpu_custom_call.1} parent=73 // pred_fallthru
          _
      $region74: #{tpu_custom_call.1} parent=5 // pred_fallthru
        _
    $region6: #{tpu_custom_call.1} parent=1 // loop_footer
      %s15 = sadd.s32 1, %s11
    $region7: #{tpu_custom_call.1} parent=1 // loop_footer_branch
      %10 = sbr.rel target = $region3
    $region8: #{tpu_custom_call.1} parent=1 // loop_exit
      _
    %942 = vsyncpa [#allocation4], 1
    %s943 = scalar_lea.sflag [#allocation4], 1
    %944 = vsyncpa %s943, 1

</llo_original>
